<compile_context>
chip_gen: v7x
topology: tpu7x:2x2x1
jax: 0.10.0
libtpu: 0.0.40
codegen_flags: <defaults>
</compile_context>

<pallas_src>
import functools

import jax
import jax.numpy as jnp
from jax.experimental import pallas as pl
from jax.experimental.pallas import tpu as pltpu


HIDDEN = 128
BN_EPS = 1e-5


def _joint_mlp_kernel(x_ref,
                      w1_ref, b1_ref,
                      w2_ref, b2_ref,
                      w3_ref, b3_ref,
                      wo_ref, bo_ref,
                      o_ref):
    """Whole MLP forward on one [tm, F] batch tile (weights VMEM-resident)."""
    # Layer 1: Linear(F -> 128) + ReLU   (bf16 MXU, f32 accumulate)
    x = x_ref[...].astype(jnp.bfloat16)
    h = jnp.dot(x, w1_ref[...], preferred_element_type=jnp.float32) + b1_ref[...]
    h = jnp.maximum(h, 0.0)

    # Block 1: (BN folded into weights) Linear(128 -> 128) + ReLU + Dropout(id)
    h = jnp.dot(h.astype(jnp.bfloat16), w2_ref[...],
                preferred_element_type=jnp.float32) + b2_ref[...]
    h = jnp.maximum(h, 0.0)

    # Block 2
    h = jnp.dot(h.astype(jnp.bfloat16), w3_ref[...],
                preferred_element_type=jnp.float32) + b3_ref[...]
    h = jnp.maximum(h, 0.0)

    # Output head: Linear(128 -> 1) + ReLU as VPU mul + lane reduction
    # (avoids an N=1 MXU pass).
    out = jnp.sum(h * wo_ref[...], axis=-1, keepdims=True) + bo_ref[...]
    o_ref[...] = jnp.maximum(out, 0.0)


def _round_up(x, m):
    return ((x + m - 1) // m) * m


def _fold_and_cast(params):
    """Fold BN scale/shift into following Linear; cast matmul weights to bf16."""
    (w1, b1, s1, t1, w2, b2, s2, t2, w3, b3, wo, bo) = params
    w2f = s1.reshape(-1, 1) * w2          # (128,128): diag(s1) @ w2
    b2f = b2 + t1 @ w2                    # (1,128)
    w3f = s2.reshape(-1, 1) * w3
    b3f = b3 + t2 @ w3
    wo_row = wo.reshape(1, HIDDEN)        # (1,128) f32 row for VPU head
    return (w1.astype(jnp.bfloat16), b1,
            w2f.astype(jnp.bfloat16), b2f,
            w3f.astype(jnp.bfloat16), b3f,
            wo_row, bo)


@functools.partial(jax.jit, static_argnames=("tm",))
def joint_network_forward(x, params, *, tm=1024):
    """x: [B, joints+7] float32 -> [B, 1] float32."""
    B, F = x.shape
    (w1, b1, w2f, b2f, w3f, b3f, wo_row, bo) = _fold_and_cast(params)

    # Batch tile: multiple of 8 sublanes, no bigger than the (padded) batch.
    tm = min(tm, _round_up(B, 8))
    B_pad = _round_up(B, tm)
    if B_pad != B:
        x = jnp.pad(x, ((0, B_pad - B), (0, 0)))
    grid = (B_pad // tm,)

    const = lambda i: (0, 0)   # weights/biases: same block every step (resident)

    out = pl.pallas_call(
        _joint_mlp_kernel,
        out_shape=jax.ShapeDtypeStruct((B_pad, 1), jnp.float32),
        grid=grid,
        in_specs=[
            pl.BlockSpec((tm, F), lambda i: (i, 0)),          # x tile
            pl.BlockSpec((F, HIDDEN), const),                 # w1 (bf16)
            pl.BlockSpec((1, HIDDEN), const),                 # b1
            pl.BlockSpec((HIDDEN, HIDDEN), const),            # w2 (folded, bf16)
            pl.BlockSpec((1, HIDDEN), const),                 # b2 (folded)
            pl.BlockSpec((HIDDEN, HIDDEN), const),            # w3 (folded, bf16)
            pl.BlockSpec((1, HIDDEN), const),                 # b3 (folded)
            pl.BlockSpec((1, HIDDEN), const),                 # wo row (f32)
            pl.BlockSpec((1, 1), const),                      # bo
        ],
        out_specs=pl.BlockSpec((tm, 1), lambda i: (i, 0)),
        compiler_params=pltpu.CompilerParams(
            dimension_semantics=("parallel",)),
    )(x, w1, b1, w2f, b2f, w3f, b3f, wo_row, bo)

    return out[:B]


def init_params(key, joints):
    """Deterministic parameter init (PyTorch-like uniform fan-in bounds)."""
    in_dim = joints + 7

    def linear(k, fan_in, fan_out):
        kw, kb = jax.random.split(k)
        bound = 1.0 / jnp.sqrt(jnp.float32(fan_in))
        w = jax.random.uniform(kw, (fan_in, fan_out), jnp.float32, -bound, bound)
        b = jax.random.uniform(kb, (1, fan_out), jnp.float32, -bound, bound)
        return w, b

    k1, k2, k3, k4, kbn1, kbn2 = jax.random.split(key, 6)
    w1, b1 = linear(k1, in_dim, HIDDEN)
    w2, b2 = linear(k2, HIDDEN, HIDDEN)
    w3, b3 = linear(k3, HIDDEN, HIDDEN)
    wo, bo = linear(k4, HIDDEN, 1)

    # BatchNorm1d params (deterministic gamma/beta; running stats at fresh-init
    # values mean=0, var=1), pre-folded to per-feature scale/shift.
    def bn_fold(k):
        kg, kb = jax.random.split(k)
        gamma = 1.0 + 0.1 * jax.random.normal(kg, (1, HIDDEN), jnp.float32)
        beta = 0.1 * jax.random.normal(kb, (1, HIDDEN), jnp.float32)
        running_mean = jnp.zeros((1, HIDDEN), jnp.float32)
        running_var = jnp.ones((1, HIDDEN), jnp.float32)
        scale = gamma / jnp.sqrt(running_var + BN_EPS)
        shift = beta - running_mean * scale
        return scale, shift

    s1, t1 = bn_fold(kbn1)
    s2, t2 = bn_fold(kbn2)

    return (w1, b1, s1, t1, w2, b2, s2, t2, w3, b3, wo, bo)


def reference_forward(x, params):
    """Pure-JAX f32 reference (un-folded BN, MXU-free) for correctness check."""
    (w1, b1, s1, t1, w2, b2, s2, t2, w3, b3, wo, bo) = params
    h = jnp.maximum(x @ w1 + b1, 0.0)
    h = jnp.maximum((h * s1 + t1) @ w2 + b2, 0.0)
    h = jnp.maximum((h * s2 + t2) @ w3 + b3, 0.0)
    return jnp.maximum(h @ wo + bo, 0.0)


if __name__ == "__main__":
    joints = 6                      # -> input feature dim = joints + 7 = 13
    batch = 8

    key = jax.random.PRNGKey(0)
    kx, kp = jax.random.split(key)
    x = jax.random.normal(kx, (batch, joints + 7), jnp.float32)
    params = init_params(kp, joints)

    out = joint_network_forward(x, params)
    out = jax.block_until_ready(out)

    ref = reference_forward(x, params)
    assert out.shape == (batch, 1), out.shape
    # bf16 MXU matmuls -> looser tolerance than the pure-f32 reference.
    assert jnp.allclose(out, ref, atol=5e-2, rtol=5e-2), "mismatch vs reference"

    print("KERNEL_OK")
</pallas_src>

<mosaic_0001>
module attributes {stable_mosaic.version = 11 : i64} {
  func.func @_joint_mlp_kernel(%arg0: i32, %arg1: memref<8x13xf32, #tpu.memory_space<vmem>>, %arg2: memref<13x128xbf16, #tpu.memory_space<vmem>>, %arg3: memref<1x128xf32, #tpu.memory_space<vmem>>, %arg4: memref<128x128xbf16, #tpu.memory_space<vmem>>, %arg5: memref<1x128xf32, #tpu.memory_space<vmem>>, %arg6: memref<128x128xbf16, #tpu.memory_space<vmem>>, %arg7: memref<1x128xf32, #tpu.memory_space<vmem>>, %arg8: memref<1x128xf32, #tpu.memory_space<vmem>>, %arg9: memref<1x1xf32, #tpu.memory_space<vmem>>, %arg10: memref<8x1xf32, #tpu.memory_space<vmem>>) attributes {dimension_semantics = [#tpu.dimension_semantics<parallel>], iteration_bounds = array<i64: 1>, scalar_prefetch = 0 : i64, scratch_operands = 0 : i64, tpu.core_type = #tpu.core_type<tc>, window_params = [{transform_indices = @transform_0, window_bounds = array<i64: 8, 13>}, {pipeline_mode = #tpu.pipeline_mode<synchronous>, transform_indices = @transform_1, window_bounds = array<i64: 13, 128>}, {pipeline_mode = #tpu.pipeline_mode<synchronous>, transform_indices = @transform_2, window_bounds = array<i64: 1, 128>}, {pipeline_mode = #tpu.pipeline_mode<synchronous>, transform_indices = @transform_3, window_bounds = array<i64: 128, 128>}, {pipeline_mode = #tpu.pipeline_mode<synchronous>, transform_indices = @transform_4, window_bounds = array<i64: 1, 128>}, {pipeline_mode = #tpu.pipeline_mode<synchronous>, transform_indices = @transform_5, window_bounds = array<i64: 128, 128>}, {pipeline_mode = #tpu.pipeline_mode<synchronous>, transform_indices = @transform_6, window_bounds = array<i64: 1, 128>}, {pipeline_mode = #tpu.pipeline_mode<synchronous>, transform_indices = @transform_7, window_bounds = array<i64: 1, 128>}, {pipeline_mode = #tpu.pipeline_mode<synchronous>, transform_indices = @transform_8, window_bounds = array<i64: 1, 1>}, {transform_indices = @transform_9, window_bounds = array<i64: 8, 1>}]} {
    %c0 = arith.constant 0 : index
    %c0_0 = arith.constant 0 : index
    %0 = vector.load %arg1[%c0, %c0_0] : memref<8x13xf32, #tpu.memory_space<vmem>>, vector<8x13xf32>
    %1 = arith.truncf %0 : vector<8x13xf32> to vector<8x13xbf16>
    %c0_1 = arith.constant 0 : index
    %c0_2 = arith.constant 0 : index
    %2 = vector.load %arg2[%c0_1, %c0_2] : memref<13x128xbf16, #tpu.memory_space<vmem>>, vector<13x128xbf16>
    %cst = arith.constant dense<0.000000e+00> : vector<8x128xf32>
    %3 = tpu.matmul %1, %2, %cst {dimension_numbers = #tpu.dot_dimension_numbers<[1], [0], [0], [1], [0, 0, 1, 1], [], []>} : vector<8x13xbf16>, vector<13x128xbf16>, vector<8x128xf32> -> vector<8x128xf32>
    %c0_3 = arith.constant 0 : index
    %c0_4 = arith.constant 0 : index
    %4 = vector.load %arg3[%c0_3, %c0_4] : memref<1x128xf32, #tpu.memory_space<vmem>>, vector<1x128xf32>
    %5 = vector.broadcast %4 : vector<1x128xf32> to vector<8x128xf32>
    %6 = arith.addf %3, %5 : vector<8x128xf32>
    %cst_5 = arith.constant 0.000000e+00 : f32
    %7 = vector.broadcast %cst_5 : f32 to vector<8x128xf32>
    %8 = arith.maximumf %6, %7 : vector<8x128xf32>
    %9 = arith.truncf %8 : vector<8x128xf32> to vector<8x128xbf16>
    %c0_6 = arith.constant 0 : index
    %c0_7 = arith.constant 0 : index
    %10 = vector.load %arg4[%c0_6, %c0_7] : memref<128x128xbf16, #tpu.memory_space<vmem>>, vector<128x128xbf16>
    %cst_8 = arith.constant dense<0.000000e+00> : vector<8x128xf32>
    %11 = tpu.matmul %9, %10, %cst_8 {dimension_numbers = #tpu.dot_dimension_numbers<[1], [0], [0], [1], [0, 0, 1, 1], [], []>} : vector<8x128xbf16>, vector<128x128xbf16>, vector<8x128xf32> -> vector<8x128xf32>
    %c0_9 = arith.constant 0 : index
    %c0_10 = arith.constant 0 : index
    %12 = vector.load %arg5[%c0_9, %c0_10] : memref<1x128xf32, #tpu.memory_space<vmem>>, vector<1x128xf32>
    %13 = vector.broadcast %12 : vector<1x128xf32> to vector<8x128xf32>
    %14 = arith.addf %11, %13 : vector<8x128xf32>
    %cst_11 = arith.constant 0.000000e+00 : f32
    %15 = vector.broadcast %cst_11 : f32 to vector<8x128xf32>
    %16 = arith.maximumf %14, %15 : vector<8x128xf32>
    %17 = arith.truncf %16 : vector<8x128xf32> to vector<8x128xbf16>
    %c0_12 = arith.constant 0 : index
    %c0_13 = arith.constant 0 : index
    %18 = vector.load %arg6[%c0_12, %c0_13] : memref<128x128xbf16, #tpu.memory_space<vmem>>, vector<128x128xbf16>
    %cst_14 = arith.constant dense<0.000000e+00> : vector<8x128xf32>
    %19 = tpu.matmul %17, %18, %cst_14 {dimension_numbers = #tpu.dot_dimension_numbers<[1], [0], [0], [1], [0, 0, 1, 1], [], []>} : vector<8x128xbf16>, vector<128x128xbf16>, vector<8x128xf32> -> vector<8x128xf32>
    %c0_15 = arith.constant 0 : index
    %c0_16 = arith.constant 0 : index
    %20 = vector.load %arg7[%c0_15, %c0_16] : memref<1x128xf32, #tpu.memory_space<vmem>>, vector<1x128xf32>
    %21 = vector.broadcast %20 : vector<1x128xf32> to vector<8x128xf32>
    %22 = arith.addf %19, %21 : vector<8x128xf32>
    %cst_17 = arith.constant 0.000000e+00 : f32
    %23 = vector.broadcast %cst_17 : f32 to vector<8x128xf32>
    %24 = arith.maximumf %22, %23 : vector<8x128xf32>
    %c0_18 = arith.constant 0 : index
    %c0_19 = arith.constant 0 : index
    %25 = vector.load %arg8[%c0_18, %c0_19] : memref<1x128xf32, #tpu.memory_space<vmem>>, vector<1x128xf32>
    %26 = vector.broadcast %25 : vector<1x128xf32> to vector<8x128xf32>
    %27 = arith.mulf %24, %26 : vector<8x128xf32>
    %cst_20 = arith.constant dense<0.000000e+00> : vector<8xf32>
    %28 = vector.multi_reduction <add>, %27, %cst_20 [1] : vector<8x128xf32> to vector<8xf32>
    %29 = vector.shape_cast %28 : vector<8xf32> to vector<8x1xf32>
    %c0_21 = arith.constant 0 : index
    %c0_22 = arith.constant 0 : index
    %30 = vector.load %arg9[%c0_21, %c0_22] : memref<1x1xf32, #tpu.memory_space<vmem>>, vector<1x1xf32>
    %31 = vector.broadcast %30 : vector<1x1xf32> to vector<8x1xf32>
    %32 = arith.addf %29, %31 : vector<8x1xf32>
    %cst_23 = arith.constant 0.000000e+00 : f32
    %33 = vector.broadcast %cst_23 : f32 to vector<8x1xf32>
    %34 = arith.maximumf %32, %33 : vector<8x1xf32>
    %c0_24 = arith.constant 0 : index
    %c0_25 = arith.constant 0 : index
    %35 = vector.load %arg10[%c0_24, %c0_25] : memref<8x1xf32, #tpu.memory_space<vmem>>, vector<8x1xf32>
    tpu.vector_store %arg10[%c0_24, %c0_25], %34 {strides = array<i32>} : memref<8x1xf32, #tpu.memory_space<vmem>>, vector<8x1xf32>,
    return
  }
  func.func @transform_0(%arg0: i32) -> (i32, i32) {
    %c0_i32 = arith.constant 0 : i32
    %c0_i32_0 = arith.constant 0 : i32
    return %arg0, %c0_i32 : i32, i32
  }
  func.func @transform_1(%arg0: i32) -> (i32, i32) {
    %c0_i32 = arith.constant 0 : i32
    %c0_i32_0 = arith.constant 0 : i32
    %c0_i32_1 = arith.constant 0 : i32
    return %c0_i32, %c0_i32_0 : i32, i32
  }
  func.func @transform_2(%arg0: i32) -> (i32, i32) {
    %c0_i32 = arith.constant 0 : i32
    %c0_i32_0 = arith.constant 0 : i32
    %c0_i32_1 = arith.constant 0 : i32
    return %c0_i32, %c0_i32_0 : i32, i32
  }
  func.func @transform_3(%arg0: i32) -> (i32, i32) {
    %c0_i32 = arith.constant 0 : i32
    %c0_i32_0 = arith.constant 0 : i32
    %c0_i32_1 = arith.constant 0 : i32
    return %c0_i32, %c0_i32_0 : i32, i32
  }
  func.func @transform_4(%arg0: i32) -> (i32, i32) {
    %c0_i32 = arith.constant 0 : i32
    %c0_i32_0 = arith.constant 0 : i32
    %c0_i32_1 = arith.constant 0 : i32
    return %c0_i32, %c0_i32_0 : i32, i32
  }
  func.func @transform_5(%arg0: i32) -> (i32, i32) {
    %c0_i32 = arith.constant 0 : i32
    %c0_i32_0 = arith.constant 0 : i32
    %c0_i32_1 = arith.constant 0 : i32
    return %c0_i32, %c0_i32_0 : i32, i32
  }
  func.func @transform_6(%arg0: i32) -> (i32, i32) {
    %c0_i32 = arith.constant 0 : i32
    %c0_i32_0 = arith.constant 0 : i32
    %c0_i32_1 = arith.constant 0 : i32
    return %c0_i32, %c0_i32_0 : i32, i32
  }
  func.func @transform_7(%arg0: i32) -> (i32, i32) {
    %c0_i32 = arith.constant 0 : i32
    %c0_i32_0 = arith.constant 0 : i32
    %c0_i32_1 = arith.constant 0 : i32
    return %c0_i32, %c0_i32_0 : i32, i32
  }
  func.func @transform_8(%arg0: i32) -> (i32, i32) {
    %c0_i32 = arith.constant 0 : i32
    %c0_i32_0 = arith.constant 0 : i32
    %c0_i32_1 = arith.constant 0 : i32
    return %c0_i32, %c0_i32_0 : i32, i32
  }
  func.func @transform_9(%arg0: i32) -> (i32, i32) {
    %c0_i32 = arith.constant 0 : i32
    %c0_i32_0 = arith.constant 0 : i32
    return %arg0, %c0_i32 : i32, i32
  }
}

</mosaic_0001>

<llo_original>
// kernel: joint_network_forward.1
$region0: #{joint_network_forward.1}
  #allocation0 [shape = 'u32[]', space=smem, size = 0x4, offset = 0x4, fixed_abs, tag = 'smem constant byte address 0x4 - core index']
  #allocation1 [shape = 'u32[144,128]{1,0:T(1,128)}', space=vmem, size = 0x12000, scoped, tag = 'internal scratch']
  #allocation2 [shape = 'f32[1,1]{1,0:T(1,128)S(1)}', space=vmem, size = 0x200, scoped, tag = 'scoped memory for joint_network_forward.1']
  %s0 = inlined_call_operand.vmem [shape: f32[8,13], index: 0, kind: input, shape index: {}]
  %s1 = inlined_call_operand.vmem [shape: bf16[13,128], index: 1, kind: input, shape index: {}]
  %s2 = inlined_call_operand.vmem [shape: f32[1,128], index: 2, kind: input, shape index: {}]
  %s3 = inlined_call_operand.vmem [shape: bf16[128,128], index: 3, kind: input, shape index: {}]
  %s4 = inlined_call_operand.vmem [shape: f32[1,128], index: 4, kind: input, shape index: {}]
  %s5 = inlined_call_operand.vmem [shape: bf16[128,128], index: 5, kind: input, shape index: {}]
  %s6 = inlined_call_operand.vmem [shape: f32[1,128], index: 6, kind: input, shape index: {}]
  %s7 = inlined_call_operand.vmem [shape: f32[1,128], index: 7, kind: input, shape index: {}]
  %s8 = inlined_call_operand.<no memory space> [shape: f32[1,1], index: 8, kind: input, shape index: {}]
  %s9 = inlined_call_operand.vmem [shape: f32[8,1], index: 9, kind: output, shape index: {}]
  %s10 = sld [smem:[#allocation0]]
  $region46: #{joint_network_forward.1} parent=0
    _
  %s12 = ssub.s32 1, %s10
  %s13 = scalar_select 0, %s12, %s10
  %v14 = vstv %s8
  %15 = vst [vmem:[#allocation2] sm:$0x1] %v14
  // Predicated region
  $region2: #{joint_network_forward.1} parent=0 // pred_check
    _
  $region3: #{joint_network_forward.1} parent=0 // pred_check_branch
    %17 = sbr.rel (0) target = $region5
  $region4: #{joint_network_forward.1} parent=0 // pred_region
    _
  $region5: #{joint_network_forward.1} parent=0 // pred_fallthru
    _
  // Predicated region
  $region6: #{joint_network_forward.1} parent=0 // pred_check
    _
  $region7: #{joint_network_forward.1} parent=0 // pred_check_branch
    %19 = sbr.rel (0) target = $region9
  $region8: #{joint_network_forward.1} parent=0 // pred_region
    _
  $region9: #{joint_network_forward.1} parent=0 // pred_fallthru
    _
  // Predicated region
  $region10: #{joint_network_forward.1} parent=0 // pred_check
    _
  $region11: #{joint_network_forward.1} parent=0 // pred_check_branch
    %21 = sbr.rel (0) target = $region13
  $region12: #{joint_network_forward.1} parent=0 // pred_region
    _
  $region13: #{joint_network_forward.1} parent=0 // pred_fallthru
    _
  // Predicated region
  $region14: #{joint_network_forward.1} parent=0 // pred_check
    _
  $region15: #{joint_network_forward.1} parent=0 // pred_check_branch
    %23 = sbr.rel (0) target = $region17
  $region16: #{joint_network_forward.1} parent=0 // pred_region
    _
  $region17: #{joint_network_forward.1} parent=0 // pred_fallthru
    _
  // Predicated region
  $region18: #{joint_network_forward.1} parent=0 // pred_check
    _
  $region19: #{joint_network_forward.1} parent=0 // pred_check_branch
    %25 = sbr.rel (0) target = $region21
  $region20: #{joint_network_forward.1} parent=0 // pred_region
    _
  $region21: #{joint_network_forward.1} parent=0 // pred_fallthru
    _
  // Predicated region
  $region22: #{joint_network_forward.1} parent=0 // pred_check
    _
  $region23: #{joint_network_forward.1} parent=0 // pred_check_branch
    %27 = sbr.rel (0) target = $region25
  $region24: #{joint_network_forward.1} parent=0 // pred_region
    _
  $region25: #{joint_network_forward.1} parent=0 // pred_fallthru
    _
  // Predicated region
  $region26: #{joint_network_forward.1} parent=0 // pred_check
    _
  $region27: #{joint_network_forward.1} parent=0 // pred_check_branch
    %29 = sbr.rel (0) target = $region29
  $region28: #{joint_network_forward.1} parent=0 // pred_region
    _
  $region29: #{joint_network_forward.1} parent=0 // pred_fallthru
    _
  // Predicated region
  $region30: #{joint_network_forward.1} parent=0 // pred_check
    _
  $region31: #{joint_network_forward.1} parent=0 // pred_check_branch
    %31 = sbr.rel (0) target = $region33
  $region32: #{joint_network_forward.1} parent=0 // pred_region
    _
  $region33: #{joint_network_forward.1} parent=0 // pred_fallthru
    _
  // Predicated region
  $region34: #{joint_network_forward.1} parent=0 // pred_check
    _
  $region35: #{joint_network_forward.1} parent=0 // pred_check_branch
    %33 = sbr.rel (0) target = $region37
  $region36: #{joint_network_forward.1} parent=0 // pred_region
    _
  $region37: #{joint_network_forward.1} parent=0 // pred_fallthru
    _
  %v35 = vld [vmem:[%s0] sm:$0xff]
  %v36 = vpack.c.bf16 %v35, %v35
  %v37 = vld [vmem:[%s1] sm:$0xf]
  %v38 = vld [vmem:[%s1 + $0x4] sm:$0x7]
  %v39 = vld [vmem:[%s2] sm:$0x1]
  %v41 = vlaneseq
  %v42 = vshrl.u32 %v41, 7
  %v43 = vsub.s32 0, %v42
  %v44 = vrot.slane %v39, %v43
  %v48 = vunpack.c.l.b16 %v37
  %v49 = vunpack.c.l.b16 %v38
  %v50 = vpack.c.b16 %v49, %v48
  %vm51 = vcmask 105472
  %v53 = vsel %vm51, %v36, 0
  %vm55 = vcmask 1045504
  %vm56 = vcmask 1046528
  %v57 = vsel %vm55, 4294967295, 65535
  %v58 = vsel %vm56, %v57, 0
  %v60 = vand.u32 %v50, %v58
  %62 = vmatprep.subr.bf16.mxu0 0
  %63 = vmatpush1.bf16.msra.mxu0 %v60
  %64 = vmatprep.subr.bf16.mxu0 0
  %65 = vmatpush1.bf16.msra.mxu0 0
  %66 = vmatprep.subr.bf16.mxu0 0
  %67 = vmatpush1.bf16.msra.mxu0 0
  %68 = vmatprep.subr.bf16.mxu0 0
  %69 = vmatpush1.bf16.msra.mxu0 0
  %70 = vmatprep.subr.bf16.mxu0 0
  %71 = vmatpush1.bf16.msra.mxu0 0
  %72 = vmatprep.subr.bf16.mxu0 0
  %73 = vmatpush1.bf16.msra.mxu0 0
  %74 = vmatprep.subr.bf16.mxu0 0
  %75 = vmatpush1.bf16.msra.mxu0 0
  %76 = vmatprep.subr.bf16.mxu0 0
  %77 = vmatpush1.bf16.msra.mxu0 0
  %78 = vmatprep.subr.bf16.mxu0 0
  %79 = vmatpush1.bf16.msra.mxu0 0
  %80 = vmatprep.subr.bf16.mxu0 0
  %81 = vmatpush1.bf16.msra.mxu0 0
  %82 = vmatprep.subr.bf16.mxu0 0
  %83 = vmatpush1.bf16.msra.mxu0 0
  %84 = vmatprep.subr.bf16.mxu0 0
  %85 = vmatpush1.bf16.msra.mxu0 0
  %86 = vmatprep.subr.bf16.mxu0 0
  %87 = vmatpush1.bf16.msra.mxu0 0
  %88 = vmatprep.subr.bf16.mxu0 0
  %89 = vmatpush1.bf16.msra.mxu0 0
  %90 = vmatprep.subr.bf16.mxu0 0
  %91 = vmatpush1.bf16.msra.mxu0 0
  %92 = vmatprep.subr.bf16.mxu0 0
  %93 = vmatpush1.bf16.msra.mxu0 0
  %94 = vmatprep.mubr.bf16.mxu0 0
  %95 = vmatmul.mubr.bf16.gmra.mrb[0].mxu0 %v53
  %v96 = vpop.f32.mrb[0].mxu0
  %v97 = vadd.f32 %v44, %v96
  %v98 = vpop.f32.mrb[0].mxu0
  %v99 = vpop.f32.mrb[0].mxu0
  %v100 = vpop.f32.mrb[0].mxu0
  %101 = vdwg.mxu0
  %v102 = vmax.f32 %v97, 0.0
  %v103 = vpack.c.bf16 %v102, %v102
  %v104 = vld [vmem:[%s3] sm:$0xf]
  %v105 = vld [vmem:[%s3 + $0x4] sm:$0xf]
  %v106 = vld [vmem:[%s3 + $0x8] sm:$0xf]
  %v107 = vld [vmem:[%s3 + $0xc] sm:$0xf]
  %v108 = vld [vmem:[%s3 + $0x10] sm:$0xf]
  %v109 = vld [vmem:[%s3 + $0x14] sm:$0xf]
  %v110 = vld [vmem:[%s3 + $0x18] sm:$0xf]
  %v111 = vld [vmem:[%s3 + $0x1c] sm:$0xf]
  %v112 = vld [vmem:[%s3 + $0x20] sm:$0xf]
  %v113 = vld [vmem:[%s3 + $0x24] sm:$0xf]
  %v114 = vld [vmem:[%s3 + $0x28] sm:$0xf]
  %v115 = vld [vmem:[%s3 + $0x2c] sm:$0xf]
  %v116 = vld [vmem:[%s3 + $0x30] sm:$0xf]
  %v117 = vld [vmem:[%s3 + $0x34] sm:$0xf]
  %v118 = vld [vmem:[%s3 + $0x38] sm:$0xf]
  %v119 = vld [vmem:[%s3 + $0x3c] sm:$0xf]
  %v120 = vld [vmem:[%s4] sm:$0x1]
  %v122 = vlaneseq
  %v123 = vshrl.u32 %v122, 7
  %v124 = vsub.s32 0, %v123
  %v125 = vrot.slane %v120, %v124
  %v143 = vunpack.c.l.b16 %v104
  %v144 = vunpack.c.l.b16 %v105
  %v145 = vunpack.c.l.b16 %v106
  %v146 = vunpack.c.l.b16 %v107
  %v147 = vunpack.c.l.b16 %v108
  %v148 = vunpack.c.l.b16 %v109
  %v149 = vunpack.c.l.b16 %v110
  %v150 = vunpack.c.l.b16 %v111
  %v151 = vunpack.c.l.b16 %v112
  %v152 = vunpack.c.l.b16 %v113
  %v153 = vunpack.c.l.b16 %v114
  %v154 = vunpack.c.l.b16 %v115
  %v155 = vunpack.c.l.b16 %v116
  %v156 = vunpack.c.l.b16 %v117
  %v157 = vunpack.c.l.b16 %v118
  %v158 = vunpack.c.l.b16 %v119
  %v159 = vpack.c.b16 %v144, %v143
  %v160 = vpack.c.b16 %v146, %v145
  %v161 = vpack.c.b16 %v148, %v147
  %v162 = vpack.c.b16 %v150, %v149
  %v163 = vpack.c.b16 %v152, %v151
  %v164 = vpack.c.b16 %v154, %v153
  %v165 = vpack.c.b16 %v156, %v155
  %v166 = vpack.c.b16 %v158, %v157
  %175 = vmatprep.subr.bf16.mxu0 0
  %176 = vmatpush1.bf16.msra.mxu0 %v159
  %177 = vmatprep.subr.bf16.mxu0 0
  %178 = vmatpush1.bf16.msra.mxu0 %v160
  %179 = vmatprep.subr.bf16.mxu0 0
  %180 = vmatpush1.bf16.msra.mxu0 %v161
  %181 = vmatprep.subr.bf16.mxu0 0
  %182 = vmatpush1.bf16.msra.mxu0 %v162
  %183 = vmatprep.subr.bf16.mxu0 0
  %184 = vmatpush1.bf16.msra.mxu0 %v163
  %185 = vmatprep.subr.bf16.mxu0 0
  %186 = vmatpush1.bf16.msra.mxu0 %v164
  %187 = vmatprep.subr.bf16.mxu0 0
  %188 = vmatpush1.bf16.msra.mxu0 %v165
  %189 = vmatprep.subr.bf16.mxu0 0
  %190 = vmatpush1.bf16.msra.mxu0 %v166
  %191 = vmatprep.subr.bf16.mxu0 0
  %192 = vmatpush1.bf16.msra.mxu0 0
  %193 = vmatprep.subr.bf16.mxu0 0
  %194 = vmatpush1.bf16.msra.mxu0 0
  %195 = vmatprep.subr.bf16.mxu0 0
  %196 = vmatpush1.bf16.msra.mxu0 0
  %197 = vmatprep.subr.bf16.mxu0 0
  %198 = vmatpush1.bf16.msra.mxu0 0
  %199 = vmatprep.subr.bf16.mxu0 0
  %200 = vmatpush1.bf16.msra.mxu0 0
  %201 = vmatprep.subr.bf16.mxu0 0
  %202 = vmatpush1.bf16.msra.mxu0 0
  %203 = vmatprep.subr.bf16.mxu0 0
  %204 = vmatpush1.bf16.msra.mxu0 0
  %205 = vmatprep.subr.bf16.mxu0 0
  %206 = vmatpush1.bf16.msra.mxu0 0
  %207 = vmatprep.mubr.bf16.mxu0 0
  %208 = vmatmul.mubr.bf16.gmra.mrb[0].mxu0 %v103
  %v209 = vpop.f32.mrb[0].mxu0
  %v210 = vadd.f32 %v125, %v209
  %v211 = vpop.f32.mrb[0].mxu0
  %v212 = vpop.f32.mrb[0].mxu0
  %v213 = vpop.f32.mrb[0].mxu0
  %214 = vdwg.mxu0
  %v215 = vmax.f32 %v210, 0.0
  %v216 = vpack.c.bf16 %v215, %v215
  %v217 = vld [vmem:[%s5] sm:$0xf]
  %v218 = vld [vmem:[%s5 + $0x4] sm:$0xf]
  %v219 = vld [vmem:[%s5 + $0x8] sm:$0xf]
  %v220 = vld [vmem:[%s5 + $0xc] sm:$0xf]
  %v221 = vld [vmem:[%s5 + $0x10] sm:$0xf]
  %v222 = vld [vmem:[%s5 + $0x14] sm:$0xf]
  %v223 = vld [vmem:[%s5 + $0x18] sm:$0xf]
  %v224 = vld [vmem:[%s5 + $0x1c] sm:$0xf]
  %v225 = vld [vmem:[%s5 + $0x20] sm:$0xf]
  %v226 = vld [vmem:[%s5 + $0x24] sm:$0xf]
  %v227 = vld [vmem:[%s5 + $0x28] sm:$0xf]
  %v228 = vld [vmem:[%s5 + $0x2c] sm:$0xf]
  %v229 = vld [vmem:[%s5 + $0x30] sm:$0xf]
  %v230 = vld [vmem:[%s5 + $0x34] sm:$0xf]
  %v231 = vld [vmem:[%s5 + $0x38] sm:$0xf]
  %v232 = vld [vmem:[%s5 + $0x3c] sm:$0xf]
  %v233 = vld [vmem:[%s6] sm:$0x1]
  %v235 = vlaneseq
  %v236 = vshrl.u32 %v235, 7
  %v237 = vsub.s32 0, %v236
  %v238 = vrot.slane %v233, %v237
  %v256 = vunpack.c.l.b16 %v217
  %v257 = vunpack.c.l.b16 %v218
  %v258 = vunpack.c.l.b16 %v219
  %v259 = vunpack.c.l.b16 %v220
  %v260 = vunpack.c.l.b16 %v221
  %v261 = vunpack.c.l.b16 %v222
  %v262 = vunpack.c.l.b16 %v223
  %v263 = vunpack.c.l.b16 %v224
  %v264 = vunpack.c.l.b16 %v225
  %v265 = vunpack.c.l.b16 %v226
  %v266 = vunpack.c.l.b16 %v227
  %v267 = vunpack.c.l.b16 %v228
  %v268 = vunpack.c.l.b16 %v229
  %v269 = vunpack.c.l.b16 %v230
  %v270 = vunpack.c.l.b16 %v231
  %v271 = vunpack.c.l.b16 %v232
  %v272 = vpack.c.b16 %v257, %v256
  %v273 = vpack.c.b16 %v259, %v258
  %v274 = vpack.c.b16 %v261, %v260
  %v275 = vpack.c.b16 %v263, %v262
  %v276 = vpack.c.b16 %v265, %v264
  %v277 = vpack.c.b16 %v267, %v266
  %v278 = vpack.c.b16 %v269, %v268
  %v279 = vpack.c.b16 %v271, %v270
  %288 = vmatprep.subr.bf16.mxu0 0
  %289 = vmatpush1.bf16.msra.mxu0 %v272
  %290 = vmatprep.subr.bf16.mxu0 0
  %291 = vmatpush1.bf16.msra.mxu0 %v273
  %292 = vmatprep.subr.bf16.mxu0 0
  %293 = vmatpush1.bf16.msra.mxu0 %v274
  %294 = vmatprep.subr.bf16.mxu0 0
  %295 = vmatpush1.bf16.msra.mxu0 %v275
  %296 = vmatprep.subr.bf16.mxu0 0
  %297 = vmatpush1.bf16.msra.mxu0 %v276
  %298 = vmatprep.subr.bf16.mxu0 0
  %299 = vmatpush1.bf16.msra.mxu0 %v277
  %300 = vmatprep.subr.bf16.mxu0 0
  %301 = vmatpush1.bf16.msra.mxu0 %v278
  %302 = vmatprep.subr.bf16.mxu0 0
  %303 = vmatpush1.bf16.msra.mxu0 %v279
  %304 = vmatprep.subr.bf16.mxu0 0
  %305 = vmatpush1.bf16.msra.mxu0 0
  %306 = vmatprep.subr.bf16.mxu0 0
  %307 = vmatpush1.bf16.msra.mxu0 0
  %308 = vmatprep.subr.bf16.mxu0 0
  %309 = vmatpush1.bf16.msra.mxu0 0
  %310 = vmatprep.subr.bf16.mxu0 0
  %311 = vmatpush1.bf16.msra.mxu0 0
  %312 = vmatprep.subr.bf16.mxu0 0
  %313 = vmatpush1.bf16.msra.mxu0 0
  %314 = vmatprep.subr.bf16.mxu0 0
  %315 = vmatpush1.bf16.msra.mxu0 0
  %316 = vmatprep.subr.bf16.mxu0 0
  %317 = vmatpush1.bf16.msra.mxu0 0
  %318 = vmatprep.subr.bf16.mxu0 0
  %319 = vmatpush1.bf16.msra.mxu0 0
  %320 = vmatprep.mubr.bf16.mxu0 0
  %321 = vmatmul.mubr.bf16.gmra.mrb[0].mxu0 %v216
  %v322 = vpop.f32.mrb[0].mxu0
  %v323 = vadd.f32 %v238, %v322
  %v324 = vpop.f32.mrb[0].mxu0
  %v325 = vpop.f32.mrb[0].mxu0
  %v326 = vpop.f32.mrb[0].mxu0
  %327 = vdwg.mxu0
  %v328 = vmax.f32 %v323, 0.0
  %v329 = vld [vmem:[%s7] sm:$0x1]
  %v331 = vlaneseq
  %v332 = vshrl.u32 %v331, 7
  %v333 = vsub.s32 0, %v332
  %v334 = vrot.slane %v329, %v333
  %v336 = vmul.f32 %v328, %v334
  %337 = vadd.xlane.f32.xlu0 %v336
  %v338 = vpop.xlane.xlu0 %337
  %v339 = vld [vmem:[#allocation2] sm:$0x1]
  %v341 = vlaneseq
  %v342 = vshrl.u32 %v341, 7
  %v343 = vsub.s32 0, %v342
  %v344 = vrot.slane %v339, %v343
  %v346 = vadd.f32 %v338, %v344
  %v347 = vmax.f32 %v346, 0.0
  %vm348 = vcmask 7168
  %349 = vst.msk [vmem:[%s9] sm:$0xff] %vm348, %v347
  // Predicated region
  $region38: #{joint_network_forward.1} parent=0 // pred_check
    _
  $region39: #{joint_network_forward.1} parent=0 // pred_check_branch
    %351 = sbr.rel (0) target = $region41
  $region40: #{joint_network_forward.1} parent=0 // pred_region
    _
  $region41: #{joint_network_forward.1} parent=0 // pred_fallthru
    _
  // Predicated region
  $region42: #{joint_network_forward.1} parent=0 // pred_check
    _
  $region43: #{joint_network_forward.1} parent=0 // pred_check_branch
    %353 = sbr.rel (0) target = $region45
  $region44: #{joint_network_forward.1} parent=0 // pred_region
    _
  $region45: #{joint_network_forward.1} parent=0 // pred_fallthru
    _

</llo_original>
